<compile_context>
chip_gen: v5e
topology: v5e:2x2
jax: 0.10.0
libtpu: 0.0.40
codegen_flags: <defaults>
</compile_context>

<pallas_src>
import math
import functools

import jax
import jax.numpy as jnp
from jax.experimental import pallas as pl
from jax.experimental.pallas import tpu as pltpu

LN_EPS = 1e-5
COMPUTE_DTYPE = jnp.bfloat16  # MXU input dtype; accumulation stays f32.


def _layer_norm(v, g, b):
    mu = jnp.mean(v, axis=-1, keepdims=True)
    var = jnp.mean((v - mu) ** 2, axis=-1, keepdims=True)
    return (v - mu) * jax.lax.rsqrt(var + LN_EPS) * g + b


# --------------------------------------------------------------------------
# Kernel 1: LN0 + packed QKV projection, column-chunked, head-major packed output
# --------------------------------------------------------------------------
def _qkv_proj_kernel(x_ref, ln_g_ref, ln_b_ref, w_ref, b_ref, qkv_ref, xn_sc,
                     *, dh: int, hpc: int):
    ci = pl.program_id(2)

    # LN0 computed once per (batch, row-tile); reused for every weight column chunk.
    @pl.when(ci == 0)
    def _():
        x = x_ref[0].astype(jnp.float32)                              # (TS, D)
        xn = _layer_norm(x, ln_g_ref[...], ln_b_ref[...])             # f32 stats
        xn_sc[...] = xn.astype(xn_sc.dtype)

    # One MXU matmul against this column chunk of the packed [wq*scale | wk | wv] weight.
    res = jnp.dot(xn_sc[...], w_ref[...],
                  preferred_element_type=jnp.float32) + b_ref[...]    # (TS, hpc*dh) f32

    # Store each head of this chunk into its slot of the packed head-major output.
    for h in range(hpc):
        qkv_ref[0, h] = res[:, h * dh:(h + 1) * dh].astype(qkv_ref.dtype)


# --------------------------------------------------------------------------
# Kernel 2: flash attention (online softmax over KV grid axis) + out-proj + residual
# --------------------------------------------------------------------------
def _flash_attn_kernel(x_ref, q_ref, k_ref, v_ref, wo_ref, bo_ref,
                       x1_ref, m_sc, l_sc, acc_sc):
    ki = pl.program_id(2)

    @pl.when(ki == 0)
    def _():
        m_sc[...] = jnp.full(m_sc.shape, -jnp.inf, jnp.float32)
        l_sc[...] = jnp.zeros(l_sc.shape, jnp.float32)
        acc_sc[...] = jnp.zeros(acc_sc.shape, jnp.float32)

    q = q_ref[0]                                          # (H, TQ, dh)  bf16 (pre-scaled)
    k = k_ref[0]                                          # (H, TKV, dh) bf16
    v = v_ref[0]                                          # (H, TKV, dh) bf16

    s = jnp.einsum("hqd,hkd->hqk", q, k,
                   preferred_element_type=jnp.float32)    # (H, TQ, TKV) f32

    m_prev = m_sc[...]
    m_new = jnp.maximum(m_prev, jnp.max(s, axis=-1, keepdims=True))
    alpha = jnp.exp(m_prev - m_new)
    p = jnp.exp(s - m_new)

    l_sc[...] = alpha * l_sc[...] + jnp.sum(p, axis=-1, keepdims=True)
    acc_sc[...] = alpha * acc_sc[...] + jnp.einsum(
        "hqk,hkd->hqd", p.astype(v.dtype), v, preferred_element_type=jnp.float32)
    m_sc[...] = m_new

    @pl.when(ki == pl.num_programs(2) - 1)
    def _():
        attn = acc_sc[...] * pl.reciprocal(l_sc[...], approx=True)     # (H, TQ, dh) f32
        nh = attn.shape[0]
        # Lane-concat heads -> (TQ, D), then a single D-deep out-projection matmul
        # (replaces per-head dh-deep matmuls + (H, TQ, D) intermediate).
        attn_flat = jnp.concatenate([attn[h] for h in range(nh)], axis=-1)
        proj = jnp.dot(attn_flat.astype(wo_ref.dtype), wo_ref[...],
                       preferred_element_type=jnp.float32) + bo_ref[...]   # (TQ, D)
        x1_ref[0] = (x_ref[0].astype(jnp.float32) + proj).astype(x1_ref.dtype)


# --------------------------------------------------------------------------
# Kernel 3: LN1 + fused gate/up SwiGLU + down-proj (ff-dim tiled w/ accumulator) + residual
# --------------------------------------------------------------------------
def _ffn_kernel(x1_ref, ln_g_ref, ln_b_ref, w_gu_ref, b_gu_ref, w_down_ref, b_down_ref,
                out_ref, xn_sc, acc_sc, *, tile_ff: int):
    fi = pl.program_id(2)

    @pl.when(fi == 0)
    def _():
        x1 = x1_ref[0].astype(jnp.float32)
        xn = _layer_norm(x1, ln_g_ref[...], ln_b_ref[...])
        xn_sc[...] = xn.astype(xn_sc.dtype)               # LN computed once per row tile
        acc_sc[...] = jnp.zeros(acc_sc.shape, jnp.float32)

    # Fused gate/up projection for this ff chunk: one (TS, D) x (D, 2*tile_ff) matmul.
    gu = jnp.dot(xn_sc[...], w_gu_ref[0],
                 preferred_element_type=jnp.float32) + b_gu_ref[0]      # (TS, 2*tile_ff)
    g = gu[:, :tile_ff]
    u = gu[:, tile_ff:]
    gated = (g * jax.nn.sigmoid(g)) * u                                 # SiLU in f32

    acc_sc[...] += jnp.dot(gated.astype(w_down_ref.dtype), w_down_ref[...],
                           preferred_element_type=jnp.float32)          # (TS, D)

    @pl.when(fi == pl.num_programs(2) - 1)
    def _():
        out_ref[0] = (x1_ref[0].astype(jnp.float32) + acc_sc[...]
                      + b_down_ref[...]).astype(out_ref.dtype)


# --------------------------------------------------------------------------
# Wrapper helpers
# --------------------------------------------------------------------------
def _pick_tile(n, pref):
    """Largest divisor of n that is <= pref and sublane-aligned (multiple of 8);
    falls back to the full dimension when no such divisor exists (small / odd shapes)."""
    if n <= pref:
        return n
    for d in range(pref, 0, -1):
        if n % d == 0 and d % 8 == 0:
            return d
    return n


def _pick_qkv_chunks(nhead, dh, target_cols=1024):
    """Number of column chunks for the packed (D, 3D) QKV weight.  Chunk width is a whole
    number of heads, lane-aligned (multiple of 128) unless a single chunk is used."""
    total = 3 * nhead
    for nc in range(1, total + 1):
        if total % nc:
            continue
        cdim = (total // nc) * dh
        if nc > 1 and cdim % 128:
            continue
        if cdim <= max(target_cols, dh):
            return nc
    return 1


def _vmem_limit_bytes():
    """Per-generation scoped-VMEM limit: raise on 128 MiB parts (v5e/v6e), keep headroom
    on 64 MiB parts (v7x).  Falls back to 64 MiB if the query is unavailable."""
    default = 64 * 1024 * 1024
    try:
        cap = int(pltpu.get_tpu_info().vmem_capacity_bytes)
    except Exception:
        return default
    if cap <= 0:
        return default
    if cap <= 64 * 1024 * 1024:
        return max(32 * 1024 * 1024, int(cap * 0.80))
    return min(int(cap * 0.80), 110 * 1024 * 1024)


# --------------------------------------------------------------------------
# Wrapper
# --------------------------------------------------------------------------
def transformer_encoder_layer(x, params, nhead,
                              *, tile_s=512, tile_q=512, tile_kv=256, tile_ff=512):
    B, S, D = x.shape
    dh = D // nhead
    dim_ff = params["w_gate"].shape[1]
    cdt = COMPUTE_DTYPE
    itemsize = x.dtype.itemsize

    ts = _pick_tile(S, tile_s)
    tq = _pick_tile(S, tile_q)
    tkv = _pick_tile(S, tile_kv)        # on v5e prefer tile_kv=128 (128-deep MXU)
    tf = _pick_tile(dim_ff, tile_ff)
    ns, nq, nkv, nf = S // ts, S // tq, S // tkv, dim_ff // tf

    n_qkv_chunks = _pick_qkv_chunks(nhead, dh)
    hpc = (3 * nhead) // n_qkv_chunks           # heads per column chunk
    cdim = hpc * dh                             # weight columns per chunk

    vmem_limit = _vmem_limit_bytes()
    scale = 1.0 / math.sqrt(dh)

    # --- one-time weight packing / layout prep (would be pre-packed in deployment) ---
    # 1/sqrt(dh) folded into wq / bq so the QKV kernel is uniform across column chunks.
    wqkv = jnp.concatenate([params["wq"] * scale, params["wk"], params["wv"]],
                           axis=1).astype(cdt)                           # (D, 3D)
    bqkv = jnp.concatenate([params["bq"] * scale, params["bk"], params["bv"]],
                           axis=1).astype(jnp.float32)                   # (1, 3D)
    wo = params["wo"].astype(cdt)                                        # (D, D)
    bo = params["bo"].astype(jnp.float32)

    wg = params["w_gate"].reshape(D, nf, tf).transpose(1, 0, 2)          # (nf, D, tf)
    wu = params["w_up"].reshape(D, nf, tf).transpose(1, 0, 2)
    w_gu = jnp.concatenate([wg, wu], axis=2).astype(cdt)                 # (nf, D, 2*tf)
    b_gu = jnp.concatenate([params["b_gate"].reshape(nf, 1, tf),
                            params["b_up"].reshape(nf, 1, tf)], axis=2).astype(jnp.float32)
    w_down = params["w_down"].astype(cdt)                                # (dim_ff, D)
    b_down = params["b_down"].astype(jnp.float32)

    # ---------------- kernel 1: LN0 + column-chunked packed QKV ----------------
    ce_qkv = pl.CostEstimate(
        flops=2 * B * S * D * 3 * D,
        transcendentals=B * S,
        bytes_accessed=B * S * D * itemsize + D * 3 * D * 2 + 3 * D * 4
                       + 3 * B * nhead * S * dh * 2,
    )
    qkv = pl.pallas_call(
        functools.partial(_qkv_proj_kernel, dh=dh, hpc=hpc),
        out_shape=jax.ShapeDtypeStruct((B, 3 * nhead, S, dh), cdt),
        grid_spec=pltpu.PrefetchScalarGridSpec(
            num_scalar_prefetch=0,
            grid=(B, ns, n_qkv_chunks),
            in_specs=[
                pl.BlockSpec((1, ts, D), lambda b, si, ci: (b, si, 0)),     # src rows
                pl.BlockSpec((1, D), lambda b, si, ci: (0, 0)),             # ln0_g
                pl.BlockSpec((1, D), lambda b, si, ci: (0, 0)),             # ln0_b
                pl.BlockSpec((D, cdim), lambda b, si, ci: (0, ci)),         # wqkv chunk
                pl.BlockSpec((1, cdim), lambda b, si, ci: (0, ci)),         # bqkv chunk
            ],
            out_specs=pl.BlockSpec((1, hpc, ts, dh), lambda b, si, ci: (b, ci, si, 0)),
            scratch_shapes=[pltpu.VMEM((ts, D), cdt)],                      # LN0(src) tile
        ),
        compiler_params=pltpu.CompilerParams(
            dimension_semantics=("parallel", "parallel", "arbitrary"),
            vmem_limit_bytes=vmem_limit),
        cost_estimate=ce_qkv,
    )(x, params["ln0_g"], params["ln0_b"], wqkv, bqkv)

    # ---------------- kernel 2: flash attention + fused out-proj + residual ----------------
    ce_attn = pl.CostEstimate(
        flops=4 * B * nhead * S * S * dh + 2 * B * S * D * D,
        transcendentals=B * nhead * S * S,
        bytes_accessed=2 * B * S * D * itemsize
                       + B * nhead * S * dh * 2                 # q
                       + 2 * B * nhead * S * dh * 2 * nq        # k/v re-read per q tile
                       + D * D * 2 + D * 4,
    )
    x1 = pl.pallas_call(
        _flash_attn_kernel,
        out_shape=jax.ShapeDtypeStruct((B, S, D), x.dtype),
        grid_spec=pltpu.PrefetchScalarGridSpec(
            num_scalar_prefetch=0,
            grid=(B, nq, nkv),
            in_specs=[
                pl.BlockSpec((1, tq, D), lambda b, qi, ki: (b, qi, 0)),             # residual
                pl.BlockSpec((1, nhead, tq, dh), lambda b, qi, ki: (b, 0, qi, 0)),  # q heads
                pl.BlockSpec((1, nhead, tkv, dh), lambda b, qi, ki: (b, 1, ki, 0)), # k heads
                pl.BlockSpec((1, nhead, tkv, dh), lambda b, qi, ki: (b, 2, ki, 0)), # v heads
                pl.BlockSpec((D, D), lambda b, qi, ki: (0, 0)),                     # wo
                pl.BlockSpec((1, D), lambda b, qi, ki: (0, 0)),                     # bo
            ],
            out_specs=pl.BlockSpec((1, tq, D), lambda b, qi, ki: (b, qi, 0)),
            scratch_shapes=[
                pltpu.VMEM((nhead, tq, 1), jnp.float32),     # running max
                pltpu.VMEM((nhead, tq, 1), jnp.float32),     # running sum
                pltpu.VMEM((nhead, tq, dh), jnp.float32),    # output accumulator
            ],
        ),
        compiler_params=pltpu.CompilerParams(
            dimension_semantics=("parallel", "parallel", "arbitrary"),
            vmem_limit_bytes=vmem_limit),
        cost_estimate=ce_attn,
    )(x, qkv, qkv, qkv, wo, bo)

    # ---------------- kernel 3: LN1 + SwiGLU FFN (ff-tiled) + residual ----------------
    ce_ffn = pl.CostEstimate(
        flops=6 * B * S * D * dim_ff,
        transcendentals=B * S * dim_ff,
        bytes_accessed=2 * B * S * D * itemsize
                       + (2 * D * dim_ff + dim_ff * D) * 2 * B * ns   # weight re-stream
                       + 3 * dim_ff * 4 + D * 4,
    )
    out = pl.pallas_call(
        functools.partial(_ffn_kernel, tile_ff=tf),
        out_shape=jax.ShapeDtypeStruct((B, S, D), x.dtype),
        grid_spec=pltpu.PrefetchScalarGridSpec(
            num_scalar_prefetch=0,
            grid=(B, ns, nf),
            in_specs=[
                pl.BlockSpec((1, ts, D), lambda b, si, fi: (b, si, 0)),      # x1
                pl.BlockSpec((1, D), lambda b, si, fi: (0, 0)),              # ln1_g
                pl.BlockSpec((1, D), lambda b, si, fi: (0, 0)),              # ln1_b
                pl.BlockSpec((1, D, 2 * tf), lambda b, si, fi: (fi, 0, 0)),  # packed gate/up
                pl.BlockSpec((1, 1, 2 * tf), lambda b, si, fi: (fi, 0, 0)),  # packed biases
                pl.BlockSpec((tf, D), lambda b, si, fi: (fi, 0)),            # down-proj rows
                pl.BlockSpec((1, D), lambda b, si, fi: (0, 0)),              # b_down
            ],
            out_specs=pl.BlockSpec((1, ts, D), lambda b, si, fi: (b, si, 0)),
            scratch_shapes=[
                pltpu.VMEM((ts, D), cdt),            # LN1(x1) tile (reused across ff chunks)
                pltpu.VMEM((ts, D), jnp.float32),    # down-proj accumulator
            ],
        ),
        compiler_params=pltpu.CompilerParams(
            dimension_semantics=("parallel", "parallel", "arbitrary"),
            vmem_limit_bytes=vmem_limit),
        cost_estimate=ce_ffn,
    )(x1, params["ln1_g"], params["ln1_b"], w_gu, b_gu, w_down, b_down)

    return out


# --------------------- pure-JAX reference (for verification) -----------------
def reference_layer(x, p, nhead):
    B, S, D = x.shape
    dh = D // nhead

    xn = _layer_norm(x, p["ln0_g"], p["ln0_b"])
    q = xn @ p["wq"] + p["bq"]
    k = xn @ p["wk"] + p["bk"]
    v = xn @ p["wv"] + p["bv"]

    q = q.reshape(B, S, nhead, dh)
    k = k.reshape(B, S, nhead, dh)
    v = v.reshape(B, S, nhead, dh)

    s = jnp.einsum("bqhd,bkhd->bhqk", q, k) / math.sqrt(dh)
    p_attn = jax.nn.softmax(s, axis=-1)
    attn = jnp.einsum("bhqk,bkhd->bqhd", p_attn, v).reshape(B, S, D)
    attn = attn @ p["wo"] + p["bo"]

    x1 = x + attn

    xn2 = _layer_norm(x1, p["ln1_g"], p["ln1_b"])
    g = xn2 @ p["w_gate"] + p["b_gate"]
    u = xn2 @ p["w_up"] + p["b_up"]
    ff = ((g * jax.nn.sigmoid(g)) * u) @ p["w_down"] + p["b_down"]
    return x1 + ff


def init_params(key, d_model, dim_ff):
    ks = jax.random.split(key, 16)
    s = 0.05
    return {
        "ln0_g": 1.0 + s * jax.random.normal(ks[0], (1, d_model), jnp.float32),
        "ln0_b": s * jax.random.normal(ks[1], (1, d_model), jnp.float32),
        "wq": s * jax.random.normal(ks[2], (d_model, d_model), jnp.float32),
        "bq": s * jax.random.normal(ks[3], (1, d_model), jnp.float32),
        "wk": s * jax.random.normal(ks[4], (d_model, d_model), jnp.float32),
        "bk": s * jax.random.normal(ks[5], (1, d_model), jnp.float32),
        "wv": s * jax.random.normal(ks[6], (d_model, d_model), jnp.float32),
        "bv": s * jax.random.normal(ks[7], (1, d_model), jnp.float32),
        "wo": s * jax.random.normal(ks[8], (d_model, d_model), jnp.float32),
        "bo": s * jax.random.normal(ks[9], (1, d_model), jnp.float32),
        "ln1_g": 1.0 + s * jax.random.normal(ks[10], (1, d_model), jnp.float32),
        "ln1_b": s * jax.random.normal(ks[11], (1, d_model), jnp.float32),
        "w_gate": s * jax.random.normal(ks[12], (d_model, dim_ff), jnp.float32),
        "b_gate": s * jax.random.normal(ks[13], (1, dim_ff), jnp.float32),
        "w_up": s * jax.random.normal(ks[14], (d_model, dim_ff), jnp.float32),
        "b_up": s * jax.random.normal(ks[15], (1, dim_ff), jnp.float32),
        "w_down": s * jax.random.normal(jax.random.fold_in(key, 99), (dim_ff, d_model), jnp.float32),
        "b_down": s * jax.random.normal(jax.random.fold_in(key, 100), (1, d_model), jnp.float32),
    }


if __name__ == "__main__":
    key = jax.random.PRNGKey(0)

    B, S, D = 2, 8, 32          # batch, seq, d_model (toy config)
    NHEAD = 4
    DIM_FF = 64

    k_x, k_p = jax.random.split(key)
    x = jax.random.normal(k_x, (B, S, D), jnp.float32)
    params = init_params(k_p, D, DIM_FF)

    out = jax.block_until_ready(transformer_encoder_layer(x, params, NHEAD))
    ref = jax.block_until_ready(reference_layer(x, params, NHEAD))

    assert out.shape == (B, S, D)
    # Tolerance accounts for bf16 MXU inputs + approx reciprocal (f32 accumulation kept).
    max_err = float(jnp.max(jnp.abs(out - ref)))
    assert bool(jnp.allclose(out, ref, atol=2e-2, rtol=2e-2)), f"mismatch vs reference: {max_err}"

    print("KERNEL_OK")
</pallas_src>

<mosaic_0001>
module attributes {stable_mosaic.version = 11 : i64} {
  func.func @_qkv_proj_kernel(%arg0: i32, %arg1: i32, %arg2: i32, %arg3: memref<1x8x32xf32, #tpu.memory_space<vmem>>, %arg4: memref<1x32xf32, #tpu.memory_space<vmem>>, %arg5: memref<1x32xf32, #tpu.memory_space<vmem>>, %arg6: memref<32x96xbf16, #tpu.memory_space<vmem>>, %arg7: memref<1x96xf32, #tpu.memory_space<vmem>>, %arg8: memref<1x12x8x8xbf16, #tpu.memory_space<vmem>>, %arg9: memref<8x32xbf16, #tpu.memory_space<vmem>>) attributes {dimension_semantics = [#tpu.dimension_semantics<parallel>, #tpu.dimension_semantics<parallel>, #tpu.dimension_semantics<arbitrary>], iteration_bounds = array<i64: 2, 1, 1>, scalar_prefetch = 0 : i64, scratch_operands = 1 : i64, tpu.core_type = #tpu.core_type<tc>, window_params = [{transform_indices = @transform_0, window_bounds = array<i64: 1, 8, 32>}, {pipeline_mode = #tpu.pipeline_mode<synchronous>, transform_indices = @transform_1, window_bounds = array<i64: 1, 32>}, {pipeline_mode = #tpu.pipeline_mode<synchronous>, transform_indices = @transform_2, window_bounds = array<i64: 1, 32>}, {transform_indices = @transform_3, window_bounds = array<i64: 32, 96>}, {transform_indices = @transform_4, window_bounds = array<i64: 1, 96>}, {transform_indices = @transform_5, window_bounds = array<i64: 1, 12, 8, 8>}]} {
    %c0_i32 = arith.constant 0 : i32
    %0 = arith.cmpi eq, %arg2, %c0_i32 : i32
    %1 = arith.extui %0 : i1 to i32
    %c0_i32_0 = arith.constant 0 : i32
    %2 = arith.cmpi ne, %1, %c0_i32_0 : i32
    scf.if %2 {
      %c0_43 = arith.constant 0 : index
      %c0_44 = arith.constant 0 : index
      %c0_45 = arith.constant 0 : index
      %69 = vector.load %arg3[%c0_43, %c0_44, %c0_45] : memref<1x8x32xf32, #tpu.memory_space<vmem>>, vector<1x8x32xf32>
      %70 = vector.shape_cast %69 : vector<1x8x32xf32> to vector<8x32xf32>
      %c0_46 = arith.constant 0 : index
      %c0_47 = arith.constant 0 : index
      %71 = vector.load %arg4[%c0_46, %c0_47] : memref<1x32xf32, #tpu.memory_space<vmem>>, vector<1x32xf32>
      %c0_48 = arith.constant 0 : index
      %c0_49 = arith.constant 0 : index
      %72 = vector.load %arg5[%c0_48, %c0_49] : memref<1x32xf32, #tpu.memory_space<vmem>>, vector<1x32xf32>
      %cst_50 = arith.constant dense<0.000000e+00> : vector<8xf32>
      %73 = vector.multi_reduction <add>, %70, %cst_50 [1] : vector<8x32xf32> to vector<8xf32>
      %74 = vector.shape_cast %73 : vector<8xf32> to vector<8x1xf32>
      %cst_51 = arith.constant 3.200000e+01 : f32
      %75 = vector.broadcast %cst_51 : f32 to vector<8x1xf32>
      %76 = arith.divf %74, %75 : vector<8x1xf32>
      %77 = vector.broadcast %76 : vector<8x1xf32> to vector<8x32xf32>
      %78 = arith.subf %70, %77 : vector<8x32xf32>
      %79 = arith.mulf %78, %78 : vector<8x32xf32>
      %cst_52 = arith.constant dense<0.000000e+00> : vector<8xf32>
      %80 = vector.multi_reduction <add>, %79, %cst_52 [1] : vector<8x32xf32> to vector<8xf32>
      %81 = vector.shape_cast %80 : vector<8xf32> to vector<8x1xf32>
      %cst_53 = arith.constant 3.200000e+01 : f32
      %82 = vector.broadcast %cst_53 : f32 to vector<8x1xf32>
      %83 = arith.divf %81, %82 : vector<8x1xf32>
      %84 = vector.broadcast %76 : vector<8x1xf32> to vector<8x32xf32>
      %85 = arith.subf %70, %84 : vector<8x32xf32>
      %cst_54 = arith.constant 9.99999974E-6 : f32
      %86 = vector.broadcast %cst_54 : f32 to vector<8x1xf32>
      %87 = arith.addf %83, %86 : vector<8x1xf32>
      %88 = math.rsqrt %87 : vector<8x1xf32>
      %89 = vector.broadcast %88 : vector<8x1xf32> to vector<8x32xf32>
      %90 = arith.mulf %85, %89 : vector<8x32xf32>
      %91 = vector.broadcast %71 : vector<1x32xf32> to vector<8x32xf32>
      %92 = arith.mulf %90, %91 : vector<8x32xf32>
      %93 = vector.broadcast %72 : vector<1x32xf32> to vector<8x32xf32>
      %94 = arith.addf %92, %93 : vector<8x32xf32>
      %95 = arith.truncf %94 : vector<8x32xf32> to vector<8x32xbf16>
      %c0_55 = arith.constant 0 : index
      %c0_56 = arith.constant 0 : index
      %96 = vector.load %arg9[%c0_55, %c0_56] : memref<8x32xbf16, #tpu.memory_space<vmem>>, vector<8x32xbf16>
      tpu.vector_store %arg9[%c0_55, %c0_56], %95 {strides = array<i32>} : memref<8x32xbf16, #tpu.memory_space<vmem>>, vector<8x32xbf16>,
    } else {
    }
    %c0 = arith.constant 0 : index
    %c0_1 = arith.constant 0 : index
    %3 = vector.load %arg9[%c0, %c0_1] : memref<8x32xbf16, #tpu.memory_space<vmem>>, vector<8x32xbf16>
    %c0_2 = arith.constant 0 : index
    %c0_3 = arith.constant 0 : index
    %4 = vector.load %arg6[%c0_2, %c0_3] : memref<32x96xbf16, #tpu.memory_space<vmem>>, vector<32x96xbf16>
    %cst = arith.constant dense<0.000000e+00> : vector<8x96xf32>
    %5 = tpu.matmul %3, %4, %cst {dimension_numbers = #tpu.dot_dimension_numbers<[1], [0], [0], [1], [0, 0, 1, 1], [], []>} : vector<8x32xbf16>, vector<32x96xbf16>, vector<8x96xf32> -> vector<8x96xf32>
    %c0_4 = arith.constant 0 : index
    %c0_5 = arith.constant 0 : index
    %6 = vector.load %arg7[%c0_4, %c0_5] : memref<1x96xf32, #tpu.memory_space<vmem>>, vector<1x96xf32>
    %7 = vector.broadcast %6 : vector<1x96xf32> to vector<8x96xf32>
    %8 = arith.addf %5, %7 : vector<8x96xf32>
    %9 = vector.extract_strided_slice %8 {offsets = [0, 0], sizes = [8, 8], strides = [1, 1]} : vector<8x96xf32> to vector<8x8xf32>
    %10 = arith.truncf %9 : vector<8x8xf32> to vector<8x8xbf16>
    %c0_6 = arith.constant 0 : index
    %c0_7 = arith.constant 0 : index
    %c0_8 = arith.constant 0 : index
    %c0_9 = arith.constant 0 : index
    %11 = vector.load %arg8[%c0_6, %c0_7, %c0_8, %c0_9] : memref<1x12x8x8xbf16, #tpu.memory_space<vmem>>, vector<1x1x8x8xbf16>
    %12 = vector.shape_cast %11 : vector<1x1x8x8xbf16> to vector<8x8xbf16>
    %13 = vector.shape_cast %10 : vector<8x8xbf16> to vector<1x1x8x8xbf16>
    tpu.vector_store %arg8[%c0_6, %c0_7, %c0_8, %c0_9], %13 {strides = array<i32>} : memref<1x12x8x8xbf16, #tpu.memory_space<vmem>>, vector<1x1x8x8xbf16>,
    %14 = vector.extract_strided_slice %8 {offsets = [0, 8], sizes = [8, 8], strides = [1, 1]} : vector<8x96xf32> to vector<8x8xf32>
    %15 = arith.truncf %14 : vector<8x8xf32> to vector<8x8xbf16>
    %c0_10 = arith.constant 0 : index
    %c1 = arith.constant 1 : index
    %c0_11 = arith.constant 0 : index
    %c0_12 = arith.constant 0 : index
    %16 = vector.load %arg8[%c0_10, %c1, %c0_11, %c0_12] : memref<1x12x8x8xbf16, #tpu.memory_space<vmem>>, vector<1x1x8x8xbf16>
    %17 = vector.shape_cast %16 : vector<1x1x8x8xbf16> to vector<8x8xbf16>
    %18 = vector.shape_cast %15 : vector<8x8xbf16> to vector<1x1x8x8xbf16>
    tpu.vector_store %arg8[%c0_10, %c1, %c0_11, %c0_12], %18 {strides = array<i32>} : memref<1x12x8x8xbf16, #tpu.memory_space<vmem>>, vector<1x1x8x8xbf16>,
    %19 = vector.extract_strided_slice %8 {offsets = [0, 16], sizes = [8, 8], strides = [1, 1]} : vector<8x96xf32> to vector<8x8xf32>
    %20 = arith.truncf %19 : vector<8x8xf32> to vector<8x8xbf16>
    %c0_13 = arith.constant 0 : index
    %c2 = arith.constant 2 : index
    %c0_14 = arith.constant 0 : index
    %c0_15 = arith.constant 0 : index
    %21 = vector.load %arg8[%c0_13, %c2, %c0_14, %c0_15] : memref<1x12x8x8xbf16, #tpu.memory_space<vmem>>, vector<1x1x8x8xbf16>
    %22 = vector.shape_cast %21 : vector<1x1x8x8xbf16> to vector<8x8xbf16>
    %23 = vector.shape_cast %20 : vector<8x8xbf16> to vector<1x1x8x8xbf16>
    tpu.vector_store %arg8[%c0_13, %c2, %c0_14, %c0_15], %23 {strides = array<i32>} : memref<1x12x8x8xbf16, #tpu.memory_space<vmem>>, vector<1x1x8x8xbf16>,
    %24 = vector.extract_strided_slice %8 {offsets = [0, 24], sizes = [8, 8], strides = [1, 1]} : vector<8x96xf32> to vector<8x8xf32>
    %25 = arith.truncf %24 : vector<8x8xf32> to vector<8x8xbf16>
    %c0_16 = arith.constant 0 : index
    %c3 = arith.constant 3 : index
    %c0_17 = arith.constant 0 : index
    %c0_18 = arith.constant 0 : index
    %26 = vector.load %arg8[%c0_16, %c3, %c0_17, %c0_18] : memref<1x12x8x8xbf16, #tpu.memory_space<vmem>>, vector<1x1x8x8xbf16>
    %27 = vector.shape_cast %26 : vector<1x1x8x8xbf16> to vector<8x8xbf16>
    %28 = vector.shape_cast %25 : vector<8x8xbf16> to vector<1x1x8x8xbf16>
    tpu.vector_store %arg8[%c0_16, %c3, %c0_17, %c0_18], %28 {strides = array<i32>} : memref<1x12x8x8xbf16, #tpu.memory_space<vmem>>, vector<1x1x8x8xbf16>,
    %29 = vector.extract_strided_slice %8 {offsets = [0, 32], sizes = [8, 8], strides = [1, 1]} : vector<8x96xf32> to vector<8x8xf32>
    %30 = arith.truncf %29 : vector<8x8xf32> to vector<8x8xbf16>
    %c0_19 = arith.constant 0 : index
    %c4 = arith.constant 4 : index
    %c0_20 = arith.constant 0 : index
    %c0_21 = arith.constant 0 : index
    %31 = vector.load %arg8[%c0_19, %c4, %c0_20, %c0_21] : memref<1x12x8x8xbf16, #tpu.memory_space<vmem>>, vector<1x1x8x8xbf16>
    %32 = vector.shape_cast %31 : vector<1x1x8x8xbf16> to vector<8x8xbf16>
    %33 = vector.shape_cast %30 : vector<8x8xbf16> to vector<1x1x8x8xbf16>
    tpu.vector_store %arg8[%c0_19, %c4, %c0_20, %c0_21], %33 {strides = array<i32>} : memref<1x12x8x8xbf16, #tpu.memory_space<vmem>>, vector<1x1x8x8xbf16>,
    %34 = vector.extract_strided_slice %8 {offsets = [0, 40], sizes = [8, 8], strides = [1, 1]} : vector<8x96xf32> to vector<8x8xf32>
    %35 = arith.truncf %34 : vector<8x8xf32> to vector<8x8xbf16>
    %c0_22 = arith.constant 0 : index
    %c5 = arith.constant 5 : index
    %c0_23 = arith.constant 0 : index
    %c0_24 = arith.constant 0 : index
    %36 = vector.load %arg8[%c0_22, %c5, %c0_23, %c0_24] : memref<1x12x8x8xbf16, #tpu.memory_space<vmem>>, vector<1x1x8x8xbf16>
    %37 = vector.shape_cast %36 : vector<1x1x8x8xbf16> to vector<8x8xbf16>
    %38 = vector.shape_cast %35 : vector<8x8xbf16> to vector<1x1x8x8xbf16>
    tpu.vector_store %arg8[%c0_22, %c5, %c0_23, %c0_24], %38 {strides = array<i32>} : memref<1x12x8x8xbf16, #tpu.memory_space<vmem>>, vector<1x1x8x8xbf16>,
    %39 = vector.extract_strided_slice %8 {offsets = [0, 48], sizes = [8, 8], strides = [1, 1]} : vector<8x96xf32> to vector<8x8xf32>
    %40 = arith.truncf %39 : vector<8x8xf32> to vector<8x8xbf16>
    %c0_25 = arith.constant 0 : index
    %c6 = arith.constant 6 : index
    %c0_26 = arith.constant 0 : index
    %c0_27 = arith.constant 0 : index
    %41 = vector.load %arg8[%c0_25, %c6, %c0_26, %c0_27] : memref<1x12x8x8xbf16, #tpu.memory_space<vmem>>, vector<1x1x8x8xbf16>
    %42 = vector.shape_cast %41 : vector<1x1x8x8xbf16> to vector<8x8xbf16>
    %43 = vector.shape_cast %40 : vector<8x8xbf16> to vector<1x1x8x8xbf16>
    tpu.vector_store %arg8[%c0_25, %c6, %c0_26, %c0_27], %43 {strides = array<i32>} : memref<1x12x8x8xbf16, #tpu.memory_space<vmem>>, vector<1x1x8x8xbf16>,
    %44 = vector.extract_strided_slice %8 {offsets = [0, 56], sizes = [8, 8], strides = [1, 1]} : vector<8x96xf32> to vector<8x8xf32>
    %45 = arith.truncf %44 : vector<8x8xf32> to vector<8x8xbf16>
    %c0_28 = arith.constant 0 : index
    %c7 = arith.constant 7 : index
    %c0_29 = arith.constant 0 : index
    %c0_30 = arith.constant 0 : index
    %46 = vector.load %arg8[%c0_28, %c7, %c0_29, %c0_30] : memref<1x12x8x8xbf16, #tpu.memory_space<vmem>>, vector<1x1x8x8xbf16>
    %47 = vector.shape_cast %46 : vector<1x1x8x8xbf16> to vector<8x8xbf16>
    %48 = vector.shape_cast %45 : vector<8x8xbf16> to vector<1x1x8x8xbf16>
    tpu.vector_store %arg8[%c0_28, %c7, %c0_29, %c0_30], %48 {strides = array<i32>} : memref<1x12x8x8xbf16, #tpu.memory_space<vmem>>, vector<1x1x8x8xbf16>,
    %49 = vector.extract_strided_slice %8 {offsets = [0, 64], sizes = [8, 8], strides = [1, 1]} : vector<8x96xf32> to vector<8x8xf32>
    %50 = arith.truncf %49 : vector<8x8xf32> to vector<8x8xbf16>
    %c0_31 = arith.constant 0 : index
    %c8 = arith.constant 8 : index
    %c0_32 = arith.constant 0 : index
    %c0_33 = arith.constant 0 : index
    %51 = vector.load %arg8[%c0_31, %c8, %c0_32, %c0_33] : memref<1x12x8x8xbf16, #tpu.memory_space<vmem>>, vector<1x1x8x8xbf16>
    %52 = vector.shape_cast %51 : vector<1x1x8x8xbf16> to vector<8x8xbf16>
    %53 = vector.shape_cast %50 : vector<8x8xbf16> to vector<1x1x8x8xbf16>
    tpu.vector_store %arg8[%c0_31, %c8, %c0_32, %c0_33], %53 {strides = array<i32>} : memref<1x12x8x8xbf16, #tpu.memory_space<vmem>>, vector<1x1x8x8xbf16>,
    %54 = vector.extract_strided_slice %8 {offsets = [0, 72], sizes = [8, 8], strides = [1, 1]} : vector<8x96xf32> to vector<8x8xf32>
    %55 = arith.truncf %54 : vector<8x8xf32> to vector<8x8xbf16>
    %c0_34 = arith.constant 0 : index
    %c9 = arith.constant 9 : index
    %c0_35 = arith.constant 0 : index
    %c0_36 = arith.constant 0 : index
    %56 = vector.load %arg8[%c0_34, %c9, %c0_35, %c0_36] : memref<1x12x8x8xbf16, #tpu.memory_space<vmem>>, vector<1x1x8x8xbf16>
    %57 = vector.shape_cast %56 : vector<1x1x8x8xbf16> to vector<8x8xbf16>
    %58 = vector.shape_cast %55 : vector<8x8xbf16> to vector<1x1x8x8xbf16>
    tpu.vector_store %arg8[%c0_34, %c9, %c0_35, %c0_36], %58 {strides = array<i32>} : memref<1x12x8x8xbf16, #tpu.memory_space<vmem>>, vector<1x1x8x8xbf16>,
    %59 = vector.extract_strided_slice %8 {offsets = [0, 80], sizes = [8, 8], strides = [1, 1]} : vector<8x96xf32> to vector<8x8xf32>
    %60 = arith.truncf %59 : vector<8x8xf32> to vector<8x8xbf16>
    %c0_37 = arith.constant 0 : index
    %c10 = arith.constant 10 : index
    %c0_38 = arith.constant 0 : index
    %c0_39 = arith.constant 0 : index
    %61 = vector.load %arg8[%c0_37, %c10, %c0_38, %c0_39] : memref<1x12x8x8xbf16, #tpu.memory_space<vmem>>, vector<1x1x8x8xbf16>
    %62 = vector.shape_cast %61 : vector<1x1x8x8xbf16> to vector<8x8xbf16>
    %63 = vector.shape_cast %60 : vector<8x8xbf16> to vector<1x1x8x8xbf16>
    tpu.vector_store %arg8[%c0_37, %c10, %c0_38, %c0_39], %63 {strides = array<i32>} : memref<1x12x8x8xbf16, #tpu.memory_space<vmem>>, vector<1x1x8x8xbf16>,
    %64 = vector.extract_strided_slice %8 {offsets = [0, 88], sizes = [8, 8], strides = [1, 1]} : vector<8x96xf32> to vector<8x8xf32>
    %65 = arith.truncf %64 : vector<8x8xf32> to vector<8x8xbf16>
    %c0_40 = arith.constant 0 : index
    %c11 = arith.constant 11 : index
    %c0_41 = arith.constant 0 : index
    %c0_42 = arith.constant 0 : index
    %66 = vector.load %arg8[%c0_40, %c11, %c0_41, %c0_42] : memref<1x12x8x8xbf16, #tpu.memory_space<vmem>>, vector<1x1x8x8xbf16>
    %67 = vector.shape_cast %66 : vector<1x1x8x8xbf16> to vector<8x8xbf16>
    %68 = vector.shape_cast %65 : vector<8x8xbf16> to vector<1x1x8x8xbf16>
    tpu.vector_store %arg8[%c0_40, %c11, %c0_41, %c0_42], %68 {strides = array<i32>} : memref<1x12x8x8xbf16, #tpu.memory_space<vmem>>, vector<1x1x8x8xbf16>,
    return
  }
  func.func @transform_0(%arg0: i32, %arg1: i32, %arg2: i32) -> (i32, i32, i32) {
    %c0_i32 = arith.constant 0 : i32
    %c0_i32_0 = arith.constant 0 : i32
    return %arg0, %arg1, %c0_i32 : i32, i32, i32
  }
  func.func @transform_1(%arg0: i32, %arg1: i32, %arg2: i32) -> (i32, i32) {
    %c0_i32 = arith.constant 0 : i32
    %c0_i32_0 = arith.constant 0 : i32
    %c0_i32_1 = arith.constant 0 : i32
    return %c0_i32, %c0_i32_0 : i32, i32
  }
  func.func @transform_2(%arg0: i32, %arg1: i32, %arg2: i32) -> (i32, i32) {
    %c0_i32 = arith.constant 0 : i32
    %c0_i32_0 = arith.constant 0 : i32
    %c0_i32_1 = arith.constant 0 : i32
    return %c0_i32, %c0_i32_0 : i32, i32
  }
  func.func @transform_3(%arg0: i32, %arg1: i32, %arg2: i32) -> (i32, i32) {
    %c0_i32 = arith.constant 0 : i32
    %c0_i32_0 = arith.constant 0 : i32
    return %c0_i32, %arg2 : i32, i32
  }
  func.func @transform_4(%arg0: i32, %arg1: i32, %arg2: i32) -> (i32, i32) {
    %c0_i32 = arith.constant 0 : i32
    %c0_i32_0 = arith.constant 0 : i32
    return %c0_i32, %arg2 : i32, i32
  }
  func.func @transform_5(%arg0: i32, %arg1: i32, %arg2: i32) -> (i32, i32, i32, i32) {
    %c0_i32 = arith.constant 0 : i32
    %c0_i32_0 = arith.constant 0 : i32
    return %arg0, %arg2, %arg1, %c0_i32 : i32, i32, i32, i32
  }
}

</mosaic_0001>

<llo_original>
// kernel: tpu_custom_call.1
$region0: #{tpu_custom_call.1}
  #allocation0 [shape = 'u32[]', space=smem, size = 0x4, offset = 0x4, fixed_abs, tag = 'smem constant byte address 0x4 - core index']
  #allocation1 [shape = 'u32[72,128]{1,0:T(1,128)}', space=vmem, size = 0x9000, scoped, tag = 'internal scratch']
  #allocation2 [shape = 'bf16[8,32]{1,0:T(8,128)(2,1)}', space=vmem, size = 0x800, scoped, tag = 'scratch operand']
  %s0 = inlined_call_operand.hbm [shape: f32[2,8,32], index: 0, kind: input, shape index: {}]
  %s1 = inlined_call_operand.hbm [shape: f32[1,32], index: 1, kind: input, shape index: {}]
  %s2 = inlined_call_operand.vmem [shape: f32[1,32], index: 2, kind: input, shape index: {}]
  %s3 = inlined_call_operand.hbm [shape: bf16[32,96], index: 3, kind: input, shape index: {}]
  %s4 = inlined_call_operand.vmem [shape: f32[1,96], index: 4, kind: input, shape index: {}]
  %s5 = inlined_call_operand.vmem [shape: bf16[2,12,8,8], index: 5, kind: output, shape index: {}]
  %s6 = sld [smem:[#allocation0]]
  $region69: #{tpu_custom_call.1} parent=0
    _
  %s8 = ssub.s32 1, %s6
  %s9 = scalar_select 0, %s8, %s6
  $region1: #{tpu_custom_call.1} parent=0
    #allocation3 [shape = 'u8[8192]{0}', space=vmem, size = 0x2000, scoped, tag = 'input window, operand 0']
    #allocation4 [shape = 's32[2]{0}', space=sflag, size = 0x8, scoped, tag = 'scoped memory for tpu_custom_call.1']
    #allocation5 [shape = 'u8[512]{0}', space=vmem, size = 0x400, scoped, tag = 'input window, operand 1, single buffered']
    #allocation6 [shape = 's32[1]{0}', space=sflag, size = 0x4, scoped, tag = 'scoped memory for tpu_custom_call.1']
    #allocation7 [shape = 'u8[8192]{0}', space=vmem, size = 0x2000, scoped, tag = 'input window, operand 3, single buffered']
    %10 = vsyncpa [#allocation4], 0
    %s11 = scalar_lea.sflag [#allocation4], 1
    %12 = vsyncpa %s11, 0
    %13 = vsyncpa [#allocation6], 0
    loop: start=0, step=1, limit=4
    $region2: #{tpu_custom_call.1} parent=1 // loop_pre_header
      _
    $region3: #{tpu_custom_call.1} parent=1 // loop_header
      %s15 = sphi 0, %s19
      %p16 = scmp.ge.s32.totalorder %s15, 4
      %s22 = sphi 0, %s41
      %s23 = sphi 0, %s37
      %s24 = sphi 0, %s33
      %s25 = sphi 0, %s22
      %s26 = sphi 0, %s23
      %s27 = sphi 0, %s24
      %s28 = sphi 0, %s25
      %s29 = sphi 0, %s26
      %s30 = sphi 0, %s27
      %s46 = sphi 0, %s48
      %s49 = sphi 0, %s46
      %s50 = sphi 0, %s49
      %s66 = sphi 0, %s50
      %s70 = sphi 0, %s70
      %s72 = sphi 0, %s70
      %s73 = sphi 0, %s72
      %s87 = sphi 0, %s73
      %s91 = sphi 0, %s91
      %s93 = sphi 0, %s91
      %s94 = sphi 0, %s93
      %s108 = sphi 0, %s94
      %s114 = sphi 0, %s116
      %s117 = sphi 0, %s114
      %s118 = sphi 0, %s117
      %s134 = sphi 0, %s118
      %s140 = sphi 0, %s142
      %s143 = sphi 0, %s140
      %s144 = sphi 0, %s143
      %s160 = sphi 0, %s144
      %s170 = sphi 0, %s172
      %s173 = sphi 0, %s170
      %s174 = sphi 0, %s173
      %s190 = sphi 0, %s174
    $region4: #{tpu_custom_call.1} parent=1 // loop_header_branch
      %18 = sbr.rel (%p16) target = $region8
    $region5: #{tpu_custom_call.1} parent=1 // loop_body
      %s20 = ssub.s32 %s15, 1
      %s21 = ssub.s32 %s15, 2
      %s31 = sadd.s32 1, %s24
      %p32 = scmp.ge.s32.totalorder %s31, 1
      %s33 = scalar_select %p32, 0, %s31
      %s34 = sadd.s32 1, %s23
      %s35 = scalar_select %p32, %s34, %s23
      %p36 = scmp.ge.s32.totalorder %s35, 1
      %s37 = scalar_select %p36, 0, %s35
      %s38 = sadd.s32 1, %s22
      %s39 = scalar_select %p36, %s38, %s22
      %p40 = scmp.ge.s32.totalorder %s39, 2
      %s41 = scalar_select %p40, 0, %s39
      %s42 = ssub.s32 %s22, %s41
      %s43 = ssub.s32 %s23, %s37
      %s44 = sor.u32 %s42, %s43
      %p45 = scmp.eq.s32.totalorder %s44, 0
      %s47 = sadd.s32 %s46, 1
      %s48 = scalar_select %p45, %s46, %s47
      %p51 = pneg %p45
      %p52 = scmp.eq.s32.totalorder %s15, 1
      %p53 = por %p51, %p52
      %p54 = scmp.ne.s32.totalorder %s46, %s49
      %p55 = scmp.eq.s32.totalorder %s15, 0
      %p56 = por %p54, %p55
      %p57 = scmp.ne.s32.totalorder %s46, %s49
      %p58 = scmp.eq.s32.totalorder %s20, 1
      %p59 = por %p57, %p58
      %p60 = scmp.ne.s32.totalorder %s49, %s50
      %p61 = scmp.eq.s32.totalorder %s20, 0
      %p62 = por %p60, %p61
      %p63 = scmp.ne.s32.totalorder %s49, %s50
      %p64 = scmp.eq.s32.totalorder %s21, 1
      %p65 = por %p63, %p64
      %p67 = scmp.ne.s32.totalorder %s50, %s66
      %p68 = scmp.eq.s32.totalorder %s21, 0
      %p69 = por %p67, %p68
      %s71 = sadd.s32 %s70, 1
      %p74 = scmp.eq.s32.totalorder %s15, 1
      %p75 = scmp.ne.s32.totalorder %s70, %s72
      %p76 = scmp.eq.s32.totalorder %s15, 0
      %p77 = por %p75, %p76
      %p78 = scmp.ne.s32.totalorder %s70, %s72
      %p79 = scmp.eq.s32.totalorder %s20, 1
      %p80 = por %p78, %p79
      %p81 = scmp.ne.s32.totalorder %s72, %s73
      %p82 = scmp.eq.s32.totalorder %s20, 0
      %p83 = por %p81, %p82
      %p84 = scmp.ne.s32.totalorder %s72, %s73
      %p85 = scmp.eq.s32.totalorder %s21, 1
      %p86 = por %p84, %p85
      %p88 = scmp.ne.s32.totalorder %s73, %s87
      %p89 = scmp.eq.s32.totalorder %s21, 0
      %p90 = por %p88, %p89
      %s92 = sadd.s32 %s91, 1
      %p95 = scmp.eq.s32.totalorder %s15, 1
      %p96 = scmp.ne.s32.totalorder %s91, %s93
      %p97 = scmp.eq.s32.totalorder %s15, 0
      %p98 = por %p96, %p97
      %p99 = scmp.ne.s32.totalorder %s91, %s93
      %p100 = scmp.eq.s32.totalorder %s20, 1
      %p101 = por %p99, %p100
      %p102 = scmp.ne.s32.totalorder %s93, %s94
      %p103 = scmp.eq.s32.totalorder %s20, 0
      %p104 = por %p102, %p103
      %p105 = scmp.ne.s32.totalorder %s93, %s94
      %p106 = scmp.eq.s32.totalorder %s21, 1
      %p107 = por %p105, %p106
      %p109 = scmp.ne.s32.totalorder %s94, %s108
      %p110 = scmp.eq.s32.totalorder %s21, 0
      %p111 = por %p109, %p110
      %s112 = ssub.s32 %s24, %s33
      %p113 = scmp.eq.s32.totalorder %s112, 0
      %s115 = sadd.s32 %s114, 1
      %s116 = scalar_select %p113, %s114, %s115
      %p119 = pneg %p113
      %p120 = scmp.eq.s32.totalorder %s15, 1
      %p121 = por %p119, %p120
      %p122 = scmp.ne.s32.totalorder %s114, %s117
      %p123 = scmp.eq.s32.totalorder %s15, 0
      %p124 = por %p122, %p123
      %p125 = scmp.ne.s32.totalorder %s114, %s117
      %p126 = scmp.eq.s32.totalorder %s20, 1
      %p127 = por %p125, %p126
      %p128 = scmp.ne.s32.totalorder %s117, %s118
      %p129 = scmp.eq.s32.totalorder %s20, 0
      %p130 = por %p128, %p129
      %p131 = scmp.ne.s32.totalorder %s117, %s118
      %p132 = scmp.eq.s32.totalorder %s21, 1
      %p133 = por %p131, %p132
      %p135 = scmp.ne.s32.totalorder %s118, %s134
      %p136 = scmp.eq.s32.totalorder %s21, 0
      %p137 = por %p135, %p136
      %s138 = ssub.s32 %s24, %s33
      %p139 = scmp.eq.s32.totalorder %s138, 0
      %s141 = sadd.s32 %s140, 1
      %s142 = scalar_select %p139, %s140, %s141
      %p145 = pneg %p139
      %p146 = scmp.eq.s32.totalorder %s15, 1
      %p147 = por %p145, %p146
      %p148 = scmp.ne.s32.totalorder %s140, %s143
      %p149 = scmp.eq.s32.totalorder %s15, 0
      %p150 = por %p148, %p149
      %p151 = scmp.ne.s32.totalorder %s140, %s143
      %p152 = scmp.eq.s32.totalorder %s20, 1
      %p153 = por %p151, %p152
      %p154 = scmp.ne.s32.totalorder %s143, %s144
      %p155 = scmp.eq.s32.totalorder %s20, 0
      %p156 = por %p154, %p155
      %p157 = scmp.ne.s32.totalorder %s143, %s144
      %p158 = scmp.eq.s32.totalorder %s21, 1
      %p159 = por %p157, %p158
      %p161 = scmp.ne.s32.totalorder %s144, %s160
      %p162 = scmp.eq.s32.totalorder %s21, 0
      %p163 = por %p161, %p162
      %s164 = ssub.s32 %s22, %s41
      %s165 = ssub.s32 %s24, %s33
      %s166 = sor.u32 %s164, %s165
      %s167 = ssub.s32 %s23, %s37
      %s168 = sor.u32 %s166, %s167
      %p169 = scmp.eq.s32.totalorder %s168, 0
      %s171 = sadd.s32 %s170, 1
      %s172 = scalar_select %p169, %s170, %s171
      %p175 = pneg %p169
      %p176 = scmp.eq.s32.totalorder %s15, 1
      %p177 = por %p175, %p176
      %p178 = scmp.ne.s32.totalorder %s170, %s173
      %p179 = scmp.eq.s32.totalorder %s15, 0
      %p180 = por %p178, %p179
      %p181 = scmp.ne.s32.totalorder %s170, %s173
      %p182 = scmp.eq.s32.totalorder %s20, 1
      %p183 = por %p181, %p182
      %p184 = scmp.ne.s32.totalorder %s173, %s174
      %p185 = scmp.eq.s32.totalorder %s20, 0
      %p186 = por %p184, %p185
      %p187 = scmp.ne.s32.totalorder %s173, %s174
      %p188 = scmp.eq.s32.totalorder %s21, 1
      %p189 = por %p187, %p188
      %p191 = scmp.ne.s32.totalorder %s174, %s190
      %p192 = scmp.eq.s32.totalorder %s21, 0
      %p193 = por %p191, %p192
      %p194 = scmp.le.s32.totalorder 1, %s15
      %p195 = scmp.lt.s32.totalorder %s15, 3
      %p196 = pnand %p194, %p195
      %p197 = pneg %p196
      // Predicated region
      $region9: #{tpu_custom_call.1} parent=5 // pred_check
        _
      $region10: #{tpu_custom_call.1} parent=5 // pred_check_branch
        %199 = sbr.rel (%p196) target = $region12
      $region11: #{tpu_custom_call.1} parent=5 // pred_region
        %s200 = ssub.s32 %s15, 1
        // Predicated region
        $region13: #{tpu_custom_call.1} parent=11 // pred_check
          %p201 = pneg %p83
        $region14: #{tpu_custom_call.1} parent=11 // pred_check_branch
          %203 = sbr.rel (%p201) target = $region16
        $region15: #{tpu_custom_call.1} parent=11 // pred_region
          %205 = vsyncadd [#allocation6], 0
          %s207 = sshll.u32 %s1, 4
          %s208 = int_to_ptr.hbm [resolvable:$true] %s207
          %s209 = sshll.u32 [#allocation5], 4
          %s210 = int_to_ptr.vmem [resolvable:$true] %s209
          %212 = dma.hbm_to_vmem [thread:$0]  %s208, 16, %s210, [#allocation6]
        $region16: #{tpu_custom_call.1} parent=11 // pred_fallthru
          _
        // Predicated region
        $region17: #{tpu_custom_call.1} parent=11 // pred_check
          %p213 = pneg %p104
        $region18: #{tpu_custom_call.1} parent=11 // pred_check_branch
          %215 = sbr.rel (%p213) target = $region20
        $region19: #{tpu_custom_call.1} parent=11 // pred_region
          _
        $region20: #{tpu_custom_call.1} parent=11 // pred_fallthru
          _
        // Predicated region
        $region21: #{tpu_custom_call.1} parent=11 // pred_check
          %p216 = pneg %p130
        $region22: #{tpu_custom_call.1} parent=11 // pred_check_branch
          %218 = sbr.rel (%p216) target = $region24
        $region23: #{tpu_custom_call.1} parent=11 // pred_region
          %220 = vsyncadd [#allocation6], 0
          %s221 = smul.addr %s27, 4
          %s222 = scalar_lea.hbm %s3, %s221
          %s223 = sshll.u32 %s222, 4
          %s224 = int_to_ptr.hbm [resolvable:$true] %s223
          %s225 = sshll.u32 [#allocation7], 4
          %s226 = int_to_ptr.vmem [resolvable:$true] %s225
          %231 = dma.hbm_to_vmem [thread:$0]  %s224, 256, %s226, [#allocation6], 64, 64, 4
        $region24: #{tpu_custom_call.1} parent=11 // pred_fallthru
          _
        // Predicated region
        $region25: #{tpu_custom_call.1} parent=11 // pred_check
          %p232 = pneg %p156
        $region26: #{tpu_custom_call.1} parent=11 // pred_check_branch
          %234 = sbr.rel (%p232) target = $region28
        $region27: #{tpu_custom_call.1} parent=11 // pred_region
          %p235 = scmp.lt.s32.totalorder %s27, 0
          %s236 = scalar_select %p235, %s27, 0
          %s237 = scalar_lea.vmem %s4, %s236
        $region28: #{tpu_custom_call.1} parent=11 // pred_fallthru
          _
      $region12: #{tpu_custom_call.1} parent=5 // pred_fallthru
        _
      %p238 = scmp.lt.s32.totalorder %s15, 2
      // Predicated region
      $region29: #{tpu_custom_call.1} parent=5 // pred_check
        %p239 = pneg %p238
      $region30: #{tpu_custom_call.1} parent=5 // pred_check_branch
        %241 = sbr.rel (%p239) target = $region32
      $region31: #{tpu_custom_call.1} parent=5 // pred_region
        // Predicated region
        $region33: #{tpu_custom_call.1} parent=31 // pred_check
          %p242 = pneg %p56
        $region34: #{tpu_custom_call.1} parent=31 // pred_check_branch
          %244 = sbr.rel (%p242) target = $region36
        $region35: #{tpu_custom_call.1} parent=31 // pred_region
          %s245 = sand.u32 %s46, 1
          %s246 = scalar_lea.sflag [#allocation4], %s245
          %s247 = sand.u32 %s46, 1
          %s248 = smul.addr %s247, 8
          %s249 = scalar_lea.vmem [#allocation3], %s248
          %251 = vsyncadd %s246, 0
          %s252 = sadd.s32 %s23, %s22
          %s253 = smul.addr %s252, 8
          %s254 = scalar_lea.hbm %s0, %s253
          %s256 = sshll.u32 %s254, 4
          %s257 = int_to_ptr.hbm [resolvable:$true] %s256
          %s258 = sshll.u32 %s249, 4
          %s259 = int_to_ptr.vmem [resolvable:$true] %s258
          %261 = dma.hbm_to_vmem [thread:$0]  %s257, 128, %s259, %s246
        $region36: #{tpu_custom_call.1} parent=31 // pred_fallthru
          _
      $region32: #{tpu_custom_call.1} parent=5 // pred_fallthru
        _
      %p262 = scmp.le.s32.totalorder 1, %s15
      %p263 = scmp.lt.s32.totalorder %s15, 3
      %p264 = pnand %p262, %p263
      %p265 = pneg %p264
      // Predicated region
      $region37: #{tpu_custom_call.1} parent=5 // pred_check
        _
      $region38: #{tpu_custom_call.1} parent=5 // pred_check_branch
        %267 = sbr.rel (%p264) target = $region40
      $region39: #{tpu_custom_call.1} parent=5 // pred_region
        %s268 = ssub.s32 %s15, 1
        %s269 = sand.u32 %s49, 1
        %s270 = scalar_lea.sflag [#allocation4], %s269
        %s271 = sand.u32 %s49, 1
        %s272 = smul.addr %s271, 8
        %s273 = scalar_lea.vmem [#allocation3], %s272
        // Predicated region
        $region41: #{tpu_custom_call.1} parent=39 // pred_check
          %p274 = pneg %p62
        $region42: #{tpu_custom_call.1} parent=39 // pred_check_branch
          %276 = sbr.rel (%p274) target = $region44
        $region43: #{tpu_custom_call.1} parent=39 // pred_region
          %278 = dma.done %s270, 128
        $region44: #{tpu_custom_call.1} parent=39 // pred_fallthru
          _
        // Predicated region
        $region45: #{tpu_custom_call.1} parent=39 // pred_check
          %p279 = pneg %p83
        $region46: #{tpu_custom_call.1} parent=39 // pred_check_branch
          %281 = sbr.rel (%p279) target = $region48
        $region47: #{tpu_custom_call.1} parent=39 // pred_region
          %283 = dma.done [#allocation6], 16
        $region48: #{tpu_custom_call.1} parent=39 // pred_fallthru
          _
        // Predicated region
        $region49: #{tpu_custom_call.1} parent=39 // pred_check
          %p284 = pneg %p130
        $region50: #{tpu_custom_call.1} parent=39 // pred_check_branch
          %286 = sbr.rel (%p284) target = $region52
        $region51: #{tpu_custom_call.1} parent=39 // pred_region
          %288 = dma.done [#allocation6], 256
        $region52: #{tpu_custom_call.1} parent=39 // pred_fallthru
          _
        %s289 = sand.u32 %s49, 1
        %s290 = scalar_lea.sflag [#allocation4], %s289
        %s291 = sand.u32 %s49, 1
        %s292 = smul.addr %s291, 8
        %s293 = scalar_lea.vmem [#allocation3], %s292
        %p294 = pneg %p62
        %p295 = pneg %p59
        %p296 = pneg %p83
        %p297 = pneg %p80
        %p298 = pneg %p104
        %p299 = pneg %p101
        %p300 = pneg %p130
        %p301 = pneg %p127
        %p302 = scmp.lt.s32.totalorder %s27, 0
        %s303 = scalar_select %p302, %s27, 0
        %s304 = scalar_lea.vmem %s4, %s303
        %p305 = pneg %p156
        %p306 = pneg %p153
        %p307 = pneg %p186
        %p308 = pneg %p183
        %s309 = smul.u32 12, %s27
        %p310 = scmp.lt.s32.totalorder %s25, 1
        %s311 = scalar_select %p310, %s25, 1
        %p312 = scmp.lt.s32.totalorder %s309, 11
        %s313 = scalar_select %p312, %s309, 11
        %p314 = scmp.lt.s32.totalorder %s26, 0
        %s315 = scalar_select %p314, %s26, 0
        %s316 = sadd.s32 %s315, %s313
        %s317 = smul.addr %s311, 12
        %s318 = sadd.s32 %s316, %s317
        %s319 = smul.addr %s318, 4
        %s320 = scalar_lea.vmem %s5, %s319
        %p321 = scmp.lt.s32.totalorder %s27, 0
        %s322 = scalar_select %p321, %s27, 0
        %s323 = scalar_lea.vmem %s4, %s322
        %s324 = smul.u32 12, %s27
        %p325 = scmp.lt.s32.totalorder %s25, 1
        %s326 = scalar_select %p325, %s25, 1
        %p327 = scmp.lt.s32.totalorder %s324, 11
        %s328 = scalar_select %p327, %s324, 11
        %p329 = scmp.lt.s32.totalorder %s26, 0
        %s330 = scalar_select %p329, %s26, 0
        %s331 = sadd.s32 %s330, %s328
        %s332 = smul.addr %s326, 12
        %s333 = sadd.s32 %s331, %s332
        %s334 = smul.addr %s333, 4
        %s335 = scalar_lea.vmem %s5, %s334
        %s336 = smul.u32 12, %s27
        %p338 = scmp.eq.s32.totalorder %s27, 0
        // Predicated region
        $region53: #{tpu_custom_call.1} parent=39 // pred_check
          %p339 = pneg %p338
        $region54: #{tpu_custom_call.1} parent=39 // pred_check_branch
          %341 = sbr.rel (%p339) target = $region56
        $region55: #{tpu_custom_call.1} parent=39 // pred_region
          %v342 = vld [vmem:[%s273] sm:$0xff]
          %v343 = vld [vmem:[#allocation5] sm:$0x1]
          %v344 = vld [vmem:[%s2] sm:$0x1]
          %vm345 = vcmask 261120
          %v346 = vsel %vm345, %v342, 0.0
          %347 = vadd.xlane.f32.xlu0 %v346
          %v348 = vpop.xlane.xlu0 %347
          %v349 = vrcp.pop 32.0
          %v350 = vmul.f32 32.0, %v349
          %v351 = vsub.f32 1.0, %v350
          %v352 = vmul.f32 %v349, %v351
          %v353 = vadd.f32 %v349, %v352
          %vm354 = vweird.f32 %v349
          %v355 = vsel %vm354, %v349, %v353
          %v356 = vmul.f32 %v348, %v355
          %v357 = vsub.f32 %v342, %v356
          %v358 = vmul.f32 %v357, %v357
          %v359 = vsel %vm345, %v358, 0.0
          %360 = vadd.xlane.f32.xlu0 %v359
          %v361 = vpop.xlane.xlu0 %360
          %v362 = vmul.f32 %v361, %v355
          %v363 = vadd.f32 %v362, 1e-05
          %v364 = vrsqrt.pop %v363
          %v365 = vmul.f32 %v364, %v363
          %v366 = vmul.f32 %v365, %v364
          %v367 = vmul.f32 0.5, %v366
          %v368 = vsub.f32 1.5, %v367
          %v369 = vmul.f32 %v364, %v368
          %vm370 = vweird.f32 %v363
          %vm371 = vweird.f32 %v364
          %vm372 = vmor %vm370, %vm371
          %v373 = vsel %vm372, %v364, %v369
          %v374 = vmul.f32 %v357, %v373
          %v376 = vperm.slane %v343, 0
          %v378 = vmul.f32 %v374, %v376
          %v380 = vperm.slane %v344, 0
          %v382 = vadd.f32 %v378, %v380
          %v383 = vpack.c.bf16 %v382, %v382
          %vm384 = vcmask 257024
          %385 = vst.msk [vmem:[#allocation2] sm:$0xf] %vm384, %v383
        $region56: #{tpu_custom_call.1} parent=39 // pred_fallthru
          _
        %v386 = vld [vmem:[#allocation2] sm:$0xf]
        %v387 = vld [vmem:[#allocation7] sm:$0xf]
        %v388 = vld [vmem:[#allocation7 + $0x4] sm:$0xf]
        %v389 = vld [vmem:[#allocation7 + $0x8] sm:$0xf]
        %v390 = vld [vmem:[#allocation7 + $0xc] sm:$0xf]
        %v391 = vld [vmem:[%s323] sm:$0x1]
        %v393 = vperm.slane %v391, 0
        %v399 = vunpack.c.l.b16 %v387
        %v400 = vunpack.c.l.b16 %v388
        %v401 = vunpack.c.l.b16 %v389
        %v402 = vunpack.c.l.b16 %v390
        %v403 = vpack.c.b16 %v400, %v399
        %v404 = vpack.c.b16 %v402, %v401
        %vm407 = vcmask 261120
        %v409 = vsel %vm407, %v386, 0
        %411 = vmatpush.bf16.msra.mxu0 0
        %412 = vmatpush.bf16.msra.mxu0 0
        %413 = vmatpush.bf16.msra.mxu0 0
        %414 = vmatpush.bf16.msra.mxu0 0
        %415 = vmatpush.bf16.msra.mxu0 0
        %416 = vmatpush.bf16.msra.mxu0 0
        %417 = vmatpush.bf16.msra.mxu0 %v404
        %418 = vmatpush.bf16.msra.mxu0 %v403
        %419 = vmatmul.bf16.gmra.mxu0 %v409
        %v420 = vpop.f32.mrf.mxu0
        %v421 = vadd.f32 %v393, %v420
        %v422 = vpop.f32.mrf.mxu0
        %423 = vdwg.mxu0
        %v424 = vpack.c.bf16 %v421, %v421
        %vm425 = vcmask 60416
        %426 = vst.msk [vmem:[%s335] sm:$0xf] %vm425, %v424
        %428 = vrot.lane.b32.xlu0 %v424, 120
        %v429 = vpop.permute.xlu0 %428
        %s431 = scalar_lea.vmem %s335, 4
        %432 = vst.msk [vmem:[%s431] sm:$0xf] %vm425, %v429
        %433 = vrot.lane.b32.xlu0 %v424, 112
        %v434 = vpop.permute.xlu0 %433
        %s436 = scalar_lea.vmem %s335, 8
        %437 = vst.msk [vmem:[%s436] sm:$0xf] %vm425, %v434
        %438 = vrot.lane.b32.xlu0 %v424, 104
        %v439 = vpop.permute.xlu0 %438
        %s441 = scalar_lea.vmem %s335, 12
        %442 = vst.msk [vmem:[%s441] sm:$0xf] %vm425, %v439
        %443 = vrot.lane.b32.xlu0 %v424, 96
        %v444 = vpop.permute.xlu0 %443
        %s446 = scalar_lea.vmem %s335, 16
        %447 = vst.msk [vmem:[%s446] sm:$0xf] %vm425, %v444
        %448 = vrot.lane.b32.xlu0 %v424, 88
        %v449 = vpop.permute.xlu0 %448
        %s451 = scalar_lea.vmem %s335, 20
        %452 = vst.msk [vmem:[%s451] sm:$0xf] %vm425, %v449
        %453 = vrot.lane.b32.xlu0 %v424, 80
        %v454 = vpop.permute.xlu0 %453
        %s456 = scalar_lea.vmem %s335, 24
        %457 = vst.msk [vmem:[%s456] sm:$0xf] %vm425, %v454
        %458 = vrot.lane.b32.xlu0 %v424, 72
        %v459 = vpop.permute.xlu0 %458
        %s461 = scalar_lea.vmem %s335, 28
        %462 = vst.msk [vmem:[%s461] sm:$0xf] %vm425, %v459
        %463 = vrot.lane.b32.xlu0 %v424, 64
        %v464 = vpop.permute.xlu0 %463
        %s466 = scalar_lea.vmem %s335, 32
        %467 = vst.msk [vmem:[%s466] sm:$0xf] %vm425, %v464
        %468 = vrot.lane.b32.xlu0 %v424, 56
        %v469 = vpop.permute.xlu0 %468
        %s471 = scalar_lea.vmem %s335, 36
        %472 = vst.msk [vmem:[%s471] sm:$0xf] %vm425, %v469
        %473 = vrot.lane.b32.xlu0 %v424, 48
        %v474 = vpop.permute.xlu0 %473
        %s476 = scalar_lea.vmem %s335, 40
        %477 = vst.msk [vmem:[%s476] sm:$0xf] %vm425, %v474
        %478 = vrot.lane.b32.xlu0 %v424, 40
        %v479 = vpop.permute.xlu0 %478
        %s481 = scalar_lea.vmem %s335, 44
        %482 = vst.msk [vmem:[%s481] sm:$0xf] %vm425, %v479
        %s483 = smul.u32 12, %s27
        %p484 = scmp.lt.s32.totalorder %s25, 1
        %s485 = scalar_select %p484, %s25, 1
        %p486 = scmp.lt.s32.totalorder %s483, 11
        %s487 = scalar_select %p486, %s483, 11
        %p488 = scmp.lt.s32.totalorder %s26, 0
        %s489 = scalar_select %p488, %s26, 0
        %s490 = sadd.s32 %s489, %s487
        %s491 = smul.addr %s485, 12
        %s492 = sadd.s32 %s490, %s491
        %s493 = smul.addr %s492, 4
        %s494 = scalar_lea.vmem %s5, %s493
        // Predicated region
        $region57: #{tpu_custom_call.1} parent=39 // pred_check
          %p495 = pneg %p183
        $region58: #{tpu_custom_call.1} parent=39 // pred_check_branch
          %497 = sbr.rel (%p495) target = $region60
        $region59: #{tpu_custom_call.1} parent=39 // pred_region
          %s498 = smul.u32 12, %s27
        $region60: #{tpu_custom_call.1} parent=39 // pred_fallthru
          _
      $region40: #{tpu_custom_call.1} parent=5 // pred_fallthru
        _
      %p499 = scmp.le.s32.totalorder 2, %s15
      // Predicated region
      $region61: #{tpu_custom_call.1} parent=5 // pred_check
        %p500 = pneg %p499
      $region62: #{tpu_custom_call.1} parent=5 // pred_check_branch
        %502 = sbr.rel (%p500) target = $region64
      $region63: #{tpu_custom_call.1} parent=5 // pred_region
        %s503 = ssub.s32 %s15, 2
        // Predicated region
        $region65: #{tpu_custom_call.1} parent=63 // pred_check
          %p504 = pneg %p189
        $region66: #{tpu_custom_call.1} parent=63 // pred_check_branch
          %506 = sbr.rel (%p504) target = $region68
        $region67: #{tpu_custom_call.1} parent=63 // pred_region
          %s507 = smul.u32 12, %s30
          %p508 = scmp.lt.s32.totalorder %s28, 1
          %s509 = scalar_select %p508, %s28, 1
          %p510 = scmp.lt.s32.totalorder %s507, 11
          %s511 = scalar_select %p510, %s507, 11
          %p512 = scmp.lt.s32.totalorder %s29, 0
          %s513 = scalar_select %p512, %s29, 0
          %s514 = sadd.s32 %s513, %s511
          %s515 = smul.addr %s509, 12
          %s516 = sadd.s32 %s514, %s515
          %s517 = smul.addr %s516, 4
          %s518 = scalar_lea.vmem %s5, %s517
        $region68: #{tpu_custom_call.1} parent=63 // pred_fallthru
          _
      $region64: #{tpu_custom_call.1} parent=5 // pred_fallthru
        _
    $region6: #{tpu_custom_call.1} parent=1 // loop_footer
      %s19 = sadd.s32 1, %s15
    $region7: #{tpu_custom_call.1} parent=1 // loop_footer_branch
      %14 = sbr.rel target = $region3
    $region8: #{tpu_custom_call.1} parent=1 // loop_exit
      _
    %519 = vsyncpa [#allocation4], 1
    %s520 = scalar_lea.sflag [#allocation4], 1
    %521 = vsyncpa %s520, 1
    %522 = vsyncpa [#allocation6], 1

</llo_original>
